<compile_context>
chip_gen: v7x
topology: tpu7x:2x2x1
jax: 0.10.0
libtpu: 0.0.40
codegen_flags: <defaults>
</compile_context>

<pallas_src>
import jax
import jax.numpy as jnp
from jax.experimental import pallas as pl
from jax.experimental.pallas import tpu as pltpu


def _recip(w):
    """1/w via EUP approximate reciprocal + one Newton refinement (~1e-8 rel)."""
    r = pl.reciprocal(w, approx=True)
    return r * (2.0 - w * r)


def _digamma_pos(z):
    """digamma(z) for z >= 1 (positive-domain contract), branch-free.

    psi(z) = psi(z+6) - sum_{k=0..5} 1/(z+k), then the asymptotic series at
    w = z + 6 >= 7:
      psi(w) ~ ln(w) - 1/(2w) - 1/(12w^2) + 1/(120w^4) - 1/(252w^6).
    """
    acc = jnp.zeros_like(z)
    w = z
    for _ in range(6):                 # unconditional shifts: no compares/selects
        acc = acc - _recip(w)
        w = w + 1.0
    inv = _recip(w)
    inv2 = inv * inv
    series = (jnp.log(w)
              - 0.5 * inv
              - inv2 * (1.0 / 12.0
                        - inv2 * (1.0 / 120.0
                                  - inv2 * (1.0 / 252.0))))
    return acc + series


def _multiview_digamma_kernel(x_ref, y_ref, o_ref, acc_ref):
    # Grid = (parallel_partials, tiles_per_partial); axis 1 is the reduction.
    t = pl.program_id(1)

    @pl.when(t == 0)
    def _init():
        acc_ref[...] = jnp.zeros_like(acc_ref)

    xv = x_ref[...].astype(jnp.float32)      # (8, tile_n) class-1 logits, dense
    yv = y_ref[...].astype(jnp.float32)      # (8, tile_n) matching labels

    d = _digamma_pos(1.0 + xv)               # one fused digamma over all views
    acc_ref[...] += jnp.sum(yv * d, keepdims=True)

    @pl.when(t == pl.num_programs(1) - 1)
    def _finish():
        # Broadcast the scalar partial over the (1, 8, 128) output block; the
        # wrapper reads element [p, 0, 0] of each partial.
        o_ref[...] = jnp.broadcast_to(acc_ref[...], o_ref.shape)


def multiview_digamma_loss(x, y, *, tile_n=2048, num_parallel=2):
    """x: (N, 6) float, y: (N,) int {0,1} -> scalar f32 loss."""
    n = x.shape[0]
    assert x.shape[1] == 6, "expected 3 views of 2 classes each"

    # Only class-1 columns can contribute (y multiplies the term); keep native
    # dtype (cast to f32 inside the kernel).
    x_sel = x[:, 1::2]                                        # (N, 3)
    y_rep = jnp.broadcast_to(y.reshape(n, 1), (n, 3)).astype(jnp.int32)

    flat_x = x_sel.reshape(-1)                                # (3N,)
    flat_y = y_rep.reshape(-1)                                # (3N,)
    total = 3 * n

    # Dense (8, C) repack: 8 sublanes fully used, N mapped to the lane axis.
    cols_min = pl.cdiv(total, 8)
    tile_n = min(int(tile_n), max(128, pl.next_power_of_2(cols_min)))
    tile_n = max(128, 128 * (tile_n // 128))                  # multiple of 128
    tiles = pl.cdiv(cols_min, tile_n)
    tiles_per_core = pl.cdiv(tiles, num_parallel)
    tiles = tiles_per_core * num_parallel
    cols = tiles * tile_n

    pad = 8 * cols - total                                    # zero pads: y=0 => no contribution
    flat_x = jnp.pad(flat_x, (0, pad))
    flat_y = jnp.pad(flat_y, (0, pad))
    x2 = flat_x.reshape(8, cols)
    y2 = flat_y.reshape(8, cols)

    inp_spec = pl.BlockSpec((8, tile_n),
                            lambda p, t: (0, p * tiles_per_core + t))

    partials = pl.pallas_call(
        _multiview_digamma_kernel,
        out_shape=jax.ShapeDtypeStruct((num_parallel, 8, 128), jnp.float32),
        grid_spec=pltpu.PrefetchScalarGridSpec(
            num_scalar_prefetch=0,
            grid=(num_parallel, tiles_per_core),
            in_specs=[inp_spec, inp_spec],
            out_specs=pl.BlockSpec((1, 8, 128), lambda p, t: (p, 0, 0)),
            scratch_shapes=[pltpu.VMEM((1, 1), jnp.float32)],
        ),
        compiler_params=pltpu.CompilerParams(
            dimension_semantics=("parallel", "arbitrary")),
    )(x2, y2)

    # Sum the per-core partials and divide by the *true* N.
    return jnp.sum(partials[:, 0, 0]) / jnp.float32(n)


def _reference(x, y):
    """Pure-JAX reference mirroring the PyTorch forward (with the gather)."""
    x = x.astype(jnp.float32)
    y_f = y.astype(jnp.float32)
    total = 0.0
    for v in range(3):
        xi = x[:, 2 * v:2 * v + 2]                            # (N, 2)
        sel = jnp.take_along_axis(xi, y[:, None], axis=1)[:, 0]
        total = total + jnp.sum(y_f * jax.scipy.special.digamma(1.0 + sel))
    return total / x.shape[0]


if __name__ == "__main__":
    key = jax.random.PRNGKey(0)
    kx, ky = jax.random.split(key)

    # Small primary case matching the module: (N, 6) logits, (N,) binary labels.
    N = 8
    x = jax.random.uniform(kx, (N, 6), dtype=jnp.float32, minval=0.1, maxval=2.0)
    y = jax.random.randint(ky, (N,), 0, 2, dtype=jnp.int32)

    out = jax.block_until_ready(multiview_digamma_loss(x, y))
    ref = jax.block_until_ready(_reference(x, y))
    assert jnp.allclose(out, ref, rtol=1e-5, atol=1e-5), (out, ref)

    # Larger case with a forced small tile to exercise padding, multi-tile
    # accumulation and both parallel partials.
    N2 = 700
    kx2, ky2 = jax.random.split(ky)
    xb = jax.random.uniform(kx2, (N2, 6), dtype=jnp.float32, minval=0.1, maxval=2.0)
    yb = jax.random.randint(ky2, (N2,), 0, 2, dtype=jnp.int32)

    out2 = jax.block_until_ready(multiview_digamma_loss(xb, yb, tile_n=128))
    ref2 = jax.block_until_ready(_reference(xb, yb))
    assert jnp.allclose(out2, ref2, rtol=1e-5, atol=1e-5), (out2, ref2)

    print("KERNEL_OK")
</pallas_src>

<mosaic_0001>
module attributes {stable_mosaic.version = 11 : i64} {
  func.func @_multiview_digamma_kernel(%arg0: i32, %arg1: i32, %arg2: memref<8x128xf32, #tpu.memory_space<vmem>>, %arg3: memref<8x128xi32, #tpu.memory_space<vmem>>, %arg4: memref<1x8x128xf32, #tpu.memory_space<vmem>>, %arg5: memref<1x1xf32, #tpu.memory_space<vmem>>) attributes {dimension_semantics = [#tpu.dimension_semantics<parallel>, #tpu.dimension_semantics<arbitrary>], iteration_bounds = array<i64: 2, 1>, scalar_prefetch = 0 : i64, scratch_operands = 1 : i64, tpu.core_type = #tpu.core_type<tc>, window_params = [{transform_indices = @transform_0, window_bounds = array<i64: 8, 128>}, {transform_indices = @transform_1, window_bounds = array<i64: 8, 128>}, {transform_indices = @transform_2, window_bounds = array<i64: 1, 8, 128>}]} {
    %c0_i32 = arith.constant 0 : i32
    %0 = arith.cmpi eq, %arg1, %c0_i32 : i32
    %1 = arith.extui %0 : i1 to i32
    %c0_i32_0 = arith.constant 0 : i32
    %2 = arith.cmpi ne, %1, %c0_i32_0 : i32
    scf.if %2 {
      %cst_29 = arith.constant 0.000000e+00 : f32
      %89 = vector.broadcast %cst_29 : f32 to vector<1x1xf32>
      %c0_30 = arith.constant 0 : index
      %c0_31 = arith.constant 0 : index
      %90 = vector.load %arg5[%c0_30, %c0_31] : memref<1x1xf32, #tpu.memory_space<vmem>>, vector<1x1xf32>
      tpu.vector_store %arg5[%c0_30, %c0_31], %89 {strides = array<i32>} : memref<1x1xf32, #tpu.memory_space<vmem>>, vector<1x1xf32>,
    } else {
    }
    %c0 = arith.constant 0 : index
    %c0_1 = arith.constant 0 : index
    %3 = vector.load %arg2[%c0, %c0_1] : memref<8x128xf32, #tpu.memory_space<vmem>>, vector<8x128xf32>
    %c0_2 = arith.constant 0 : index
    %c0_3 = arith.constant 0 : index
    %4 = vector.load %arg3[%c0_2, %c0_3] : memref<8x128xi32, #tpu.memory_space<vmem>>, vector<8x128xi32>
    %5 = arith.sitofp %4 : vector<8x128xi32> to vector<8x128xf32>
    %cst = arith.constant 1.000000e+00 : f32
    %6 = vector.broadcast %cst : f32 to vector<8x128xf32>
    %7 = arith.addf %6, %3 : vector<8x128xf32>
    %cst_4 = arith.constant 0.000000e+00 : f32
    %8 = vector.broadcast %cst_4 : f32 to vector<8x128xf32>
    %9 = tpu.reciprocal %7 {approx = true} : vector<8x128xf32> -> vector<8x128xf32>
    %10 = arith.mulf %7, %9 : vector<8x128xf32>
    %cst_5 = arith.constant 2.000000e+00 : f32
    %11 = vector.broadcast %cst_5 : f32 to vector<8x128xf32>
    %12 = arith.subf %11, %10 : vector<8x128xf32>
    %13 = arith.mulf %9, %12 : vector<8x128xf32>
    %14 = arith.subf %8, %13 : vector<8x128xf32>
    %cst_6 = arith.constant 1.000000e+00 : f32
    %15 = vector.broadcast %cst_6 : f32 to vector<8x128xf32>
    %16 = arith.addf %7, %15 : vector<8x128xf32>
    %17 = tpu.reciprocal %16 {approx = true} : vector<8x128xf32> -> vector<8x128xf32>
    %18 = arith.mulf %16, %17 : vector<8x128xf32>
    %cst_7 = arith.constant 2.000000e+00 : f32
    %19 = vector.broadcast %cst_7 : f32 to vector<8x128xf32>
    %20 = arith.subf %19, %18 : vector<8x128xf32>
    %21 = arith.mulf %17, %20 : vector<8x128xf32>
    %22 = arith.subf %14, %21 : vector<8x128xf32>
    %cst_8 = arith.constant 1.000000e+00 : f32
    %23 = vector.broadcast %cst_8 : f32 to vector<8x128xf32>
    %24 = arith.addf %16, %23 : vector<8x128xf32>
    %25 = tpu.reciprocal %24 {approx = true} : vector<8x128xf32> -> vector<8x128xf32>
    %26 = arith.mulf %24, %25 : vector<8x128xf32>
    %cst_9 = arith.constant 2.000000e+00 : f32
    %27 = vector.broadcast %cst_9 : f32 to vector<8x128xf32>
    %28 = arith.subf %27, %26 : vector<8x128xf32>
    %29 = arith.mulf %25, %28 : vector<8x128xf32>
    %30 = arith.subf %22, %29 : vector<8x128xf32>
    %cst_10 = arith.constant 1.000000e+00 : f32
    %31 = vector.broadcast %cst_10 : f32 to vector<8x128xf32>
    %32 = arith.addf %24, %31 : vector<8x128xf32>
    %33 = tpu.reciprocal %32 {approx = true} : vector<8x128xf32> -> vector<8x128xf32>
    %34 = arith.mulf %32, %33 : vector<8x128xf32>
    %cst_11 = arith.constant 2.000000e+00 : f32
    %35 = vector.broadcast %cst_11 : f32 to vector<8x128xf32>
    %36 = arith.subf %35, %34 : vector<8x128xf32>
    %37 = arith.mulf %33, %36 : vector<8x128xf32>
    %38 = arith.subf %30, %37 : vector<8x128xf32>
    %cst_12 = arith.constant 1.000000e+00 : f32
    %39 = vector.broadcast %cst_12 : f32 to vector<8x128xf32>
    %40 = arith.addf %32, %39 : vector<8x128xf32>
    %41 = tpu.reciprocal %40 {approx = true} : vector<8x128xf32> -> vector<8x128xf32>
    %42 = arith.mulf %40, %41 : vector<8x128xf32>
    %cst_13 = arith.constant 2.000000e+00 : f32
    %43 = vector.broadcast %cst_13 : f32 to vector<8x128xf32>
    %44 = arith.subf %43, %42 : vector<8x128xf32>
    %45 = arith.mulf %41, %44 : vector<8x128xf32>
    %46 = arith.subf %38, %45 : vector<8x128xf32>
    %cst_14 = arith.constant 1.000000e+00 : f32
    %47 = vector.broadcast %cst_14 : f32 to vector<8x128xf32>
    %48 = arith.addf %40, %47 : vector<8x128xf32>
    %49 = tpu.reciprocal %48 {approx = true} : vector<8x128xf32> -> vector<8x128xf32>
    %50 = arith.mulf %48, %49 : vector<8x128xf32>
    %cst_15 = arith.constant 2.000000e+00 : f32
    %51 = vector.broadcast %cst_15 : f32 to vector<8x128xf32>
    %52 = arith.subf %51, %50 : vector<8x128xf32>
    %53 = arith.mulf %49, %52 : vector<8x128xf32>
    %54 = arith.subf %46, %53 : vector<8x128xf32>
    %cst_16 = arith.constant 1.000000e+00 : f32
    %55 = vector.broadcast %cst_16 : f32 to vector<8x128xf32>
    %56 = arith.addf %48, %55 : vector<8x128xf32>
    %57 = tpu.reciprocal %56 {approx = true} : vector<8x128xf32> -> vector<8x128xf32>
    %58 = arith.mulf %56, %57 : vector<8x128xf32>
    %cst_17 = arith.constant 2.000000e+00 : f32
    %59 = vector.broadcast %cst_17 : f32 to vector<8x128xf32>
    %60 = arith.subf %59, %58 : vector<8x128xf32>
    %61 = arith.mulf %57, %60 : vector<8x128xf32>
    %62 = arith.mulf %61, %61 : vector<8x128xf32>
    %63 = math.log %56 : vector<8x128xf32>
    %cst_18 = arith.constant 5.000000e-01 : f32
    %64 = vector.broadcast %cst_18 : f32 to vector<8x128xf32>
    %65 = arith.mulf %64, %61 : vector<8x128xf32>
    %66 = arith.subf %63, %65 : vector<8x128xf32>
    %cst_19 = arith.constant 0.0039682542 : f32
    %67 = vector.broadcast %cst_19 : f32 to vector<8x128xf32>
    %68 = arith.mulf %62, %67 : vector<8x128xf32>
    %cst_20 = arith.constant 0.00833333377 : f32
    %69 = vector.broadcast %cst_20 : f32 to vector<8x128xf32>
    %70 = arith.subf %69, %68 : vector<8x128xf32>
    %71 = arith.mulf %62, %70 : vector<8x128xf32>
    %cst_21 = arith.constant 0.0833333358 : f32
    %72 = vector.broadcast %cst_21 : f32 to vector<8x128xf32>
    %73 = arith.subf %72, %71 : vector<8x128xf32>
    %74 = arith.mulf %62, %73 : vector<8x128xf32>
    %75 = arith.subf %66, %74 : vector<8x128xf32>
    %76 = arith.addf %54, %75 : vector<8x128xf32>
    %c0_22 = arith.constant 0 : index
    %c0_23 = arith.constant 0 : index
    %77 = vector.load %arg5[%c0_22, %c0_23] : memref<1x1xf32, #tpu.memory_space<vmem>>, vector<1x1xf32>
    %78 = arith.mulf %5, %76 : vector<8x128xf32>
    %79 = vector.shape_cast %78 : vector<8x128xf32> to vector<1x8x128xf32>
    %cst_24 = arith.constant dense<0.000000e+00> : vector<1xf32>
    %80 = vector.multi_reduction <add>, %79, %cst_24 [1, 2] : vector<1x8x128xf32> to vector<1xf32>
    %81 = vector.shape_cast %80 : vector<1xf32> to vector<1x1x1xf32>
    %82 = vector.extract %81[0, 0, 0] : f32 from vector<1x1x1xf32>
    %83 = vector.broadcast %82 : f32 to vector<1x1xf32>
    %84 = arith.addf %77, %83 : vector<1x1xf32>
    %c0_25 = arith.constant 0 : index
    %c0_26 = arith.constant 0 : index
    %85 = vector.load %arg5[%c0_25, %c0_26] : memref<1x1xf32, #tpu.memory_space<vmem>>, vector<1x1xf32>
    tpu.vector_store %arg5[%c0_25, %c0_26], %84 {strides = array<i32>} : memref<1x1xf32, #tpu.memory_space<vmem>>, vector<1x1xf32>,
    %c0_i32_27 = arith.constant 0 : i32
    %86 = arith.cmpi eq, %arg1, %c0_i32_27 : i32
    %87 = arith.extui %86 : i1 to i32
    %c0_i32_28 = arith.constant 0 : i32
    %88 = arith.cmpi ne, %87, %c0_i32_28 : i32
    scf.if %88 {
      %c0_29 = arith.constant 0 : index
      %c0_30 = arith.constant 0 : index
      %89 = vector.load %arg5[%c0_29, %c0_30] : memref<1x1xf32, #tpu.memory_space<vmem>>, vector<1x1xf32>
      %90 = vector.shape_cast %89 : vector<1x1xf32> to vector<1x1x1xf32>
      %91 = vector.broadcast %90 : vector<1x1x1xf32> to vector<1x8x128xf32>
      %c0_31 = arith.constant 0 : index
      %c0_32 = arith.constant 0 : index
      %c0_33 = arith.constant 0 : index
      %92 = vector.load %arg4[%c0_31, %c0_32, %c0_33] : memref<1x8x128xf32, #tpu.memory_space<vmem>>, vector<1x8x128xf32>
      tpu.vector_store %arg4[%c0_31, %c0_32, %c0_33], %91 {strides = array<i32>} : memref<1x8x128xf32, #tpu.memory_space<vmem>>, vector<1x8x128xf32>,
    } else {
    }
    return
  }
  func.func @transform_0(%arg0: i32, %arg1: i32) -> (i32, i32) {
    %c1_i32 = arith.constant 1 : i32
    %0 = arith.muli %arg0, %c1_i32 : i32
    %1 = arith.addi %0, %arg1 : i32
    %c0_i32 = arith.constant 0 : i32
    %c0_i32_0 = arith.constant 0 : i32
    return %c0_i32, %1 : i32, i32
  }
  func.func @transform_1(%arg0: i32, %arg1: i32) -> (i32, i32) {
    %c1_i32 = arith.constant 1 : i32
    %0 = arith.muli %arg0, %c1_i32 : i32
    %1 = arith.addi %0, %arg1 : i32
    %c0_i32 = arith.constant 0 : i32
    %c0_i32_0 = arith.constant 0 : i32
    return %c0_i32, %1 : i32, i32
  }
  func.func @transform_2(%arg0: i32, %arg1: i32) -> (i32, i32, i32) {
    %c0_i32 = arith.constant 0 : i32
    %c0_i32_0 = arith.constant 0 : i32
    %c0_i32_1 = arith.constant 0 : i32
    return %arg0, %c0_i32, %c0_i32_0 : i32, i32, i32
  }
}

</mosaic_0001>

<llo_original>
// kernel: tpu_custom_call.1
$region0: #{tpu_custom_call.1}
  #allocation0 [shape = 'u32[]', space=smem, size = 0x4, offset = 0x4, fixed_abs, tag = 'smem constant byte address 0x4 - core index']
  #allocation1 [shape = 'u32[144,128]{1,0:T(1,128)}', space=vmem, size = 0x12000, scoped, tag = 'internal scratch']
  #allocation2 [shape = 'f32[1,1]{1,0:T(1,128)}', space=vmem, size = 0x200, scoped, tag = 'scratch operand']
  %s0 = inlined_call_operand.hbm [shape: f32[8,256], index: 0, kind: input, shape index: {}]
  %s1 = inlined_call_operand.hbm [shape: s32[8,256], index: 1, kind: input, shape index: {}]
  %s2 = inlined_call_operand.hbm [shape: f32[2,8,128], index: 2, kind: output, shape index: {}]
  %s3 = sld [smem:[#allocation0]]
  $region57: #{tpu_custom_call.1} parent=0
    _
  %s5 = ssub.s32 1, %s3
  %s6 = scalar_select 0, %s5, %s3
  $region1: #{tpu_custom_call.1} parent=0
    #allocation3 [shape = 'u8[8192]{0}', space=vmem, size = 0x2000, scoped, tag = 'input window, operand 0']
    #allocation4 [shape = 's32[2]{0}', space=sflag, size = 0x8, scoped, tag = 'scoped memory for tpu_custom_call.1']
    #allocation5 [shape = 's32[2]{0}', space=sflag, size = 0x8, scoped, tag = 'scoped memory for tpu_custom_call.1']
    #allocation6 [shape = 'u8[8192]{0}', space=vmem, size = 0x2000, scoped, tag = 'input window, operand 1']
    #allocation7 [shape = 's32[2]{0}', space=sflag, size = 0x8, scoped, tag = 'scoped memory for tpu_custom_call.1']
    #allocation8 [shape = 'u8[8192]{0}', space=vmem, size = 0x2000, scoped, tag = 'output window, operand 0']
    %7 = vsyncpa [#allocation4], 0
    %s8 = scalar_lea.sflag [#allocation4], 1
    %9 = vsyncpa %s8, 0
    %10 = vsyncpa [#allocation7], 0
    %s11 = scalar_lea.sflag [#allocation7], 1
    %12 = vsyncpa %s11, 0
    %13 = vsyncpa [#allocation5], 0
    %s14 = scalar_lea.sflag [#allocation5], 1
    %15 = vsyncpa %s14, 0
    loop: start=0, step=1, limit=4
    $region2: #{tpu_custom_call.1} parent=1 // loop_pre_header
      _
    $region3: #{tpu_custom_call.1} parent=1 // loop_header
      %s17 = sphi 0, %s21
      %p18 = scmp.ge.s32.totalorder %s17, 4
      %s24 = sphi 0, %s36
      %s25 = sphi 0, %s32
      %s26 = sphi 0, %s24
      %s27 = sphi 0, %s25
      %s28 = sphi 0, %s26
      %s29 = sphi 0, %s27
      %s41 = sphi 0, %s43
      %s44 = sphi 0, %s41
      %s45 = sphi 0, %s44
      %s61 = sphi 0, %s45
      %s69 = sphi 0, %s71
      %s72 = sphi 0, %s69
      %s73 = sphi 0, %s72
      %s89 = sphi 0, %s73
      %s95 = sphi 0, %s97
      %s98 = sphi 0, %s95
      %s99 = sphi 0, %s98
      %s115 = sphi 0, %s99
    $region4: #{tpu_custom_call.1} parent=1 // loop_header_branch
      %20 = sbr.rel (%p18) target = $region8
    $region5: #{tpu_custom_call.1} parent=1 // loop_body
      %s22 = ssub.s32 %s17, 1
      %s23 = ssub.s32 %s17, 2
      %s30 = sadd.s32 1, %s25
      %p31 = scmp.ge.s32.totalorder %s30, 1
      %s32 = scalar_select %p31, 0, %s30
      %s33 = sadd.s32 1, %s24
      %s34 = scalar_select %p31, %s33, %s24
      %p35 = scmp.ge.s32.totalorder %s34, 2
      %s36 = scalar_select %p35, 0, %s34
      %s37 = sadd.s32 %s24, %s25
      %s38 = sadd.s32 %s36, %s32
      %s39 = ssub.s32 %s37, %s38
      %p40 = scmp.eq.s32.totalorder %s39, 0
      %s42 = sadd.s32 %s41, 1
      %s43 = scalar_select %p40, %s41, %s42
      %p46 = pneg %p40
      %p47 = scmp.eq.s32.totalorder %s17, 1
      %p48 = por %p46, %p47
      %p49 = scmp.ne.s32.totalorder %s41, %s44
      %p50 = scmp.eq.s32.totalorder %s17, 0
      %p51 = por %p49, %p50
      %p52 = scmp.ne.s32.totalorder %s41, %s44
      %p53 = scmp.eq.s32.totalorder %s22, 1
      %p54 = por %p52, %p53
      %p55 = scmp.ne.s32.totalorder %s44, %s45
      %p56 = scmp.eq.s32.totalorder %s22, 0
      %p57 = por %p55, %p56
      %p58 = scmp.ne.s32.totalorder %s44, %s45
      %p59 = scmp.eq.s32.totalorder %s23, 1
      %p60 = por %p58, %p59
      %p62 = scmp.ne.s32.totalorder %s45, %s61
      %p63 = scmp.eq.s32.totalorder %s23, 0
      %p64 = por %p62, %p63
      %s65 = sadd.s32 %s24, %s25
      %s66 = sadd.s32 %s36, %s32
      %s67 = ssub.s32 %s65, %s66
      %p68 = scmp.eq.s32.totalorder %s67, 0
      %s70 = sadd.s32 %s69, 1
      %s71 = scalar_select %p68, %s69, %s70
      %p74 = pneg %p68
      %p75 = scmp.eq.s32.totalorder %s17, 1
      %p76 = por %p74, %p75
      %p77 = scmp.ne.s32.totalorder %s69, %s72
      %p78 = scmp.eq.s32.totalorder %s17, 0
      %p79 = por %p77, %p78
      %p80 = scmp.ne.s32.totalorder %s69, %s72
      %p81 = scmp.eq.s32.totalorder %s22, 1
      %p82 = por %p80, %p81
      %p83 = scmp.ne.s32.totalorder %s72, %s73
      %p84 = scmp.eq.s32.totalorder %s22, 0
      %p85 = por %p83, %p84
      %p86 = scmp.ne.s32.totalorder %s72, %s73
      %p87 = scmp.eq.s32.totalorder %s23, 1
      %p88 = por %p86, %p87
      %p90 = scmp.ne.s32.totalorder %s73, %s89
      %p91 = scmp.eq.s32.totalorder %s23, 0
      %p92 = por %p90, %p91
      %s93 = ssub.s32 %s24, %s36
      %p94 = scmp.eq.s32.totalorder %s93, 0
      %s96 = sadd.s32 %s95, 1
      %s97 = scalar_select %p94, %s95, %s96
      %p100 = pneg %p94
      %p101 = scmp.eq.s32.totalorder %s17, 1
      %p102 = por %p100, %p101
      %p103 = scmp.ne.s32.totalorder %s95, %s98
      %p104 = scmp.eq.s32.totalorder %s17, 0
      %p105 = por %p103, %p104
      %p106 = scmp.ne.s32.totalorder %s95, %s98
      %p107 = scmp.eq.s32.totalorder %s22, 1
      %p108 = por %p106, %p107
      %p109 = scmp.ne.s32.totalorder %s98, %s99
      %p110 = scmp.eq.s32.totalorder %s22, 0
      %p111 = por %p109, %p110
      %p112 = scmp.ne.s32.totalorder %s98, %s99
      %p113 = scmp.eq.s32.totalorder %s23, 1
      %p114 = por %p112, %p113
      %p116 = scmp.ne.s32.totalorder %s99, %s115
      %p117 = scmp.eq.s32.totalorder %s23, 0
      %p118 = por %p116, %p117
      %p119 = scmp.le.s32.totalorder 1, %s17
      %p120 = scmp.lt.s32.totalorder %s17, 3
      %p121 = pnand %p119, %p120
      %p122 = pneg %p121
      // Predicated region
      $region9: #{tpu_custom_call.1} parent=5 // pred_check
        _
      $region10: #{tpu_custom_call.1} parent=5 // pred_check_branch
        %124 = sbr.rel (%p121) target = $region12
      $region11: #{tpu_custom_call.1} parent=5 // pred_region
        %s125 = ssub.s32 %s17, 1
      $region12: #{tpu_custom_call.1} parent=5 // pred_fallthru
        _
      %p126 = scmp.lt.s32.totalorder %s17, 2
      // Predicated region
      $region13: #{tpu_custom_call.1} parent=5 // pred_check
        %p127 = pneg %p126
      $region14: #{tpu_custom_call.1} parent=5 // pred_check_branch
        %129 = sbr.rel (%p127) target = $region16
      $region15: #{tpu_custom_call.1} parent=5 // pred_region
        // Predicated region
        $region17: #{tpu_custom_call.1} parent=15 // pred_check
          %p130 = pneg %p51
        $region18: #{tpu_custom_call.1} parent=15 // pred_check_branch
          %132 = sbr.rel (%p130) target = $region20
        $region19: #{tpu_custom_call.1} parent=15 // pred_region
          %s133 = sand.u32 %s41, 1
          %s134 = scalar_lea.sflag [#allocation4], %s133
          %s135 = sand.u32 %s41, 1
          %s136 = smul.addr %s135, 8
          %s137 = scalar_lea.vmem [#allocation3], %s136
          %s138 = sadd.s32 %s24, %s25
          %s140 = ssub.s32 128, 128
          %141 = vsyncadd %s134, %s140
          %s142 = smul.addr %s138, 128
          %s143 = scalar_lea.hbm %s0, %s142
          %s145 = sshll.u32 %s137, 4
          %s146 = int_to_ptr.vmem [resolvable:$true] %s145
          %148 = dma.hbm_to_vmem [thread:$0]  %s143, 128, %s146, %s134
        $region20: #{tpu_custom_call.1} parent=15 // pred_fallthru
          _
        // Predicated region
        $region21: #{tpu_custom_call.1} parent=15 // pred_check
          %p149 = pneg %p79
        $region22: #{tpu_custom_call.1} parent=15 // pred_check_branch
          %151 = sbr.rel (%p149) target = $region24
        $region23: #{tpu_custom_call.1} parent=15 // pred_region
          %s152 = sand.u32 %s69, 1
          %s153 = scalar_lea.sflag [#allocation7], %s152
          %s154 = sand.u32 %s69, 1
          %s155 = smul.addr %s154, 8
          %s156 = scalar_lea.vmem [#allocation6], %s155
          %s157 = sadd.s32 %s24, %s25
          %s159 = ssub.s32 128, 128
          %160 = vsyncadd %s153, %s159
          %s161 = smul.addr %s157, 128
          %s162 = scalar_lea.hbm %s1, %s161
          %s164 = sshll.u32 %s156, 4
          %s165 = int_to_ptr.vmem [resolvable:$true] %s164
          %167 = dma.hbm_to_vmem [thread:$0]  %s162, 128, %s165, %s153
        $region24: #{tpu_custom_call.1} parent=15 // pred_fallthru
          _
      $region16: #{tpu_custom_call.1} parent=5 // pred_fallthru
        _
      %p168 = scmp.le.s32.totalorder 1, %s17
      %p169 = scmp.lt.s32.totalorder %s17, 3
      %p170 = pnand %p168, %p169
      %p171 = pneg %p170
      // Predicated region
      $region25: #{tpu_custom_call.1} parent=5 // pred_check
        _
      $region26: #{tpu_custom_call.1} parent=5 // pred_check_branch
        %173 = sbr.rel (%p170) target = $region28
      $region27: #{tpu_custom_call.1} parent=5 // pred_region
        %s174 = ssub.s32 %s17, 1
        %s175 = sand.u32 %s44, 1
        %s176 = scalar_lea.sflag [#allocation4], %s175
        %s177 = sand.u32 %s44, 1
        %s178 = smul.addr %s177, 8
        %s179 = scalar_lea.vmem [#allocation3], %s178
        // Predicated region
        $region29: #{tpu_custom_call.1} parent=27 // pred_check
          %p180 = pneg %p57
        $region30: #{tpu_custom_call.1} parent=27 // pred_check_branch
          %182 = sbr.rel (%p180) target = $region32
        $region31: #{tpu_custom_call.1} parent=27 // pred_region
          %183 = dma.done %s176, 128
        $region32: #{tpu_custom_call.1} parent=27 // pred_fallthru
          _
        %s184 = sand.u32 %s72, 1
        %s185 = scalar_lea.sflag [#allocation7], %s184
        %s186 = sand.u32 %s72, 1
        %s187 = smul.addr %s186, 8
        %s188 = scalar_lea.vmem [#allocation6], %s187
        // Predicated region
        $region33: #{tpu_custom_call.1} parent=27 // pred_check
          %p189 = pneg %p85
        $region34: #{tpu_custom_call.1} parent=27 // pred_check_branch
          %191 = sbr.rel (%p189) target = $region36
        $region35: #{tpu_custom_call.1} parent=27 // pred_region
          %192 = dma.done %s185, 128
        $region36: #{tpu_custom_call.1} parent=27 // pred_fallthru
          _
        %s193 = sand.u32 %s44, 1
        %s194 = scalar_lea.sflag [#allocation4], %s193
        %s195 = sand.u32 %s44, 1
        %s196 = smul.addr %s195, 8
        %s197 = scalar_lea.vmem [#allocation3], %s196
        %p198 = pneg %p57
        %p199 = pneg %p54
        %s200 = sand.u32 %s72, 1
        %s201 = scalar_lea.sflag [#allocation7], %s200
        %s202 = sand.u32 %s72, 1
        %s203 = smul.addr %s202, 8
        %s204 = scalar_lea.vmem [#allocation6], %s203
        %p205 = pneg %p85
        %p206 = pneg %p82
        %p207 = pneg %p111
        %p208 = pneg %p108
        %s209 = sand.u32 %s98, 1
        %s210 = scalar_lea.sflag [#allocation5], %s209
        %s211 = sand.u32 %s98, 1
        %s212 = smul.addr %s211, 8
        %s213 = scalar_lea.vmem [#allocation8], %s212
        %s214 = sadd.s32 %s26, %s27
        %s215 = sadd.s32 %s26, %s27
        %p216 = scmp.eq.s32.totalorder %s27, 0
        // Predicated region
        $region37: #{tpu_custom_call.1} parent=27 // pred_check
          %p217 = pneg %p216
        $region38: #{tpu_custom_call.1} parent=27 // pred_check_branch
          %219 = sbr.rel (%p217) target = $region40
        $region39: #{tpu_custom_call.1} parent=27 // pred_region
          %vm220 = vcmask 0
          %221 = vst.msk [vmem:[#allocation2] sm:$0x1] %vm220, 0.0
        $region40: #{tpu_custom_call.1} parent=27 // pred_fallthru
          _
        %v222 = vld [vmem:[%s179] sm:$0xff]
        %v223 = vld [vmem:[%s188] sm:$0xff]
        %v224 = vcvt.s32.f32 %v223
        %v225 = vadd.f32 %v222, 1.0
        %v226 = vrcp.pop %v225
        %v227 = vmul.f32 %v225, %v226
        %v228 = vsub.f32 2.0, %v227
        %v229 = vmul.f32 %v226, %v228
        %v230 = vsub.f32 0.0, %v229
        %v231 = vadd.f32 %v225, 1.0
        %v232 = vrcp.pop %v231
        %v233 = vmul.f32 %v231, %v232
        %v234 = vsub.f32 2.0, %v233
        %v235 = vmul.f32 %v232, %v234
        %v236 = vsub.f32 %v230, %v235
        %v237 = vadd.f32 %v231, 1.0
        %v238 = vrcp.pop %v237
        %v239 = vmul.f32 %v237, %v238
        %v240 = vsub.f32 2.0, %v239
        %v241 = vmul.f32 %v238, %v240
        %v242 = vsub.f32 %v236, %v241
        %v243 = vadd.f32 %v237, 1.0
        %v244 = vrcp.pop %v243
        %v245 = vmul.f32 %v243, %v244
        %v246 = vsub.f32 2.0, %v245
        %v247 = vmul.f32 %v244, %v246
        %v248 = vsub.f32 %v242, %v247
        %v249 = vadd.f32 %v243, 1.0
        %v250 = vrcp.pop %v249
        %v251 = vmul.f32 %v249, %v250
        %v252 = vsub.f32 2.0, %v251
        %v253 = vmul.f32 %v250, %v252
        %v254 = vsub.f32 %v248, %v253
        %v255 = vadd.f32 %v249, 1.0
        %v256 = vrcp.pop %v255
        %v257 = vmul.f32 %v255, %v256
        %v258 = vsub.f32 2.0, %v257
        %v259 = vmul.f32 %v256, %v258
        %v260 = vsub.f32 %v254, %v259
        %v261 = vadd.f32 %v255, 1.0
        %v262 = vrcp.pop %v261
        %v263 = vmul.f32 %v261, %v262
        %v264 = vsub.f32 2.0, %v263
        %v265 = vmul.f32 %v262, %v264
        %v266 = vmul.f32 %v265, %v265
        %v267 = vlog2.pop %v261
        %v268 = vmul.f32 %v267, 0.6931472
        %v269 = vmul.f32 %v265, 0.5
        %v270 = vsub.f32 %v268, %v269
        %v271 = vmul.f32 %v266, 0.003968254
        %v272 = vsub.f32 0.008333334, %v271
        %v273 = vmul.f32 %v266, %v272
        %v274 = vsub.f32 0.083333336, %v273
        %v275 = vmul.f32 %v266, %v274
        %v276 = vsub.f32 %v270, %v275
        %v277 = vadd.f32 %v260, %v276
        %v278 = vld [vmem:[#allocation2] sm:$0x1]
        %v279 = vmul.f32 %v224, %v277
        %280 = vadd.xlane.f32.xlu0 %v279
        %v281 = vpop.xlane.xlu0 %280
        %v282 = vrot.slane %v281, 4
        %v283 = vadd.f32 %v281, %v282
        %v284 = vrot.slane %v283, 2
        %v285 = vadd.f32 %v283, %v284
        %v286 = vrot.slane %v285, 1
        %v287 = vadd.f32 %v285, %v286
        %s288 = vtos %v287
        %v289 = vstv %s288
        %v290 = vadd.f32 %v278, %v289
        %vm291 = vcmask 0
        %292 = vst.msk [vmem:[#allocation2] sm:$0x1] %vm291, %v290
        // Predicated region
        $region41: #{tpu_custom_call.1} parent=27 // pred_check
          %p293 = pneg %p216
        $region42: #{tpu_custom_call.1} parent=27 // pred_check_branch
          %295 = sbr.rel (%p293) target = $region44
        $region43: #{tpu_custom_call.1} parent=27 // pred_region
          %v296 = vld [vmem:[#allocation2] sm:$0x1]
          %v298 = vlaneseq
          %v299 = vshrl.u32 %v298, 7
          %v300 = vsub.s32 0, %v299
          %v301 = vrot.slane %v296, %v300
          %302 = vset.pattern.permute.xlu0 0
          %303 = vperm.xlu0 %302, %v301
          %v304 = vpop.permute.xlu0 %303
          %306 = vst [vmem:[%s213] sm:$0xff] %v304
        $region44: #{tpu_custom_call.1} parent=27 // pred_fallthru
          _
        %s307 = sand.u32 %s98, 1
        %s308 = scalar_lea.sflag [#allocation5], %s307
        %s309 = sand.u32 %s98, 1
        %s310 = smul.addr %s309, 8
        %s311 = scalar_lea.vmem [#allocation8], %s310
        // Predicated region
        $region45: #{tpu_custom_call.1} parent=27 // pred_check
          %p312 = pneg %p108
        $region46: #{tpu_custom_call.1} parent=27 // pred_check_branch
          %314 = sbr.rel (%p312) target = $region48
        $region47: #{tpu_custom_call.1} parent=27 // pred_region
          %s316 = ssub.s32 128, 128
          %317 = vsyncadd %s308, %s316
          %s318 = smul.addr %s26, 128
          %s319 = scalar_lea.hbm %s2, %s318
          %s321 = sshll.u32 %s311, 4
          %s322 = int_to_ptr.vmem [resolvable:$true] %s321
          %324 = dma.vmem_to_hbm [thread:$0]  %s322, 128, %s319, %s308
        $region48: #{tpu_custom_call.1} parent=27 // pred_fallthru
          _
      $region28: #{tpu_custom_call.1} parent=5 // pred_fallthru
        _
      %p325 = scmp.le.s32.totalorder 2, %s17
      // Predicated region
      $region49: #{tpu_custom_call.1} parent=5 // pred_check
        %p326 = pneg %p325
      $region50: #{tpu_custom_call.1} parent=5 // pred_check_branch
        %328 = sbr.rel (%p326) target = $region52
      $region51: #{tpu_custom_call.1} parent=5 // pred_region
        %s329 = ssub.s32 %s17, 2
        // Predicated region
        $region53: #{tpu_custom_call.1} parent=51 // pred_check
          %p330 = pneg %p114
        $region54: #{tpu_custom_call.1} parent=51 // pred_check_branch
          %332 = sbr.rel (%p330) target = $region56
        $region55: #{tpu_custom_call.1} parent=51 // pred_region
          %s333 = sand.u32 %s99, 1
          %s334 = scalar_lea.sflag [#allocation5], %s333
          %s335 = sand.u32 %s99, 1
          %s336 = smul.addr %s335, 8
          %s337 = scalar_lea.vmem [#allocation8], %s336
          %338 = dma.done %s334, 128
        $region56: #{tpu_custom_call.1} parent=51 // pred_fallthru
          _
      $region52: #{tpu_custom_call.1} parent=5 // pred_fallthru
        _
    $region6: #{tpu_custom_call.1} parent=1 // loop_footer
      %s21 = sadd.s32 1, %s17
    $region7: #{tpu_custom_call.1} parent=1 // loop_footer_branch
      %16 = sbr.rel target = $region3
    $region8: #{tpu_custom_call.1} parent=1 // loop_exit
      _
    %339 = vsyncpa [#allocation4], 1
    %s340 = scalar_lea.sflag [#allocation4], 1
    %341 = vsyncpa %s340, 1
    %342 = vsyncpa [#allocation7], 1
    %s343 = scalar_lea.sflag [#allocation7], 1
    %344 = vsyncpa %s343, 1
    %345 = vsyncpa [#allocation5], 1
    %s346 = scalar_lea.sflag [#allocation5], 1
    %347 = vsyncpa %s346, 1

</llo_original>
